<compile_context>
chip_gen: v6e
topology: v6e:2x2x1
jax: 0.10.0
libtpu: 0.0.40
codegen_flags: <defaults>
</compile_context>

<pallas_src>
import math
from functools import partial

import jax
import jax.numpy as jnp
from jax.experimental import pallas as pl
from jax.experimental.pallas import tpu as pltpu


def _gem_kernel(p_ref, x_ref, o_ref, *, eps, w, log_inv_w):
    # p_ref: (1,) SMEM scalar parameter
    # x_ref: (Lb, G*W) VMEM tile — each lane-row packs G original rows of width W
    # o_ref: (Lb, G)   VMEM tile — one GeM value per packed original row
    p = p_ref[0]
    inv_p = 1.0 / p

    x = x_ref[...].astype(jnp.float32)
    x = jnp.maximum(x, eps)                       # clamp(min=eps) -> x > 0
    t = jnp.exp(p * jnp.log(x))                   # x^p via exp/log (EUP)

    gw = x_ref.shape[-1]
    g = o_ref.shape[-1]
    # 0/1 block-diagonal selector: sel[l, j] = 1 iff lane l lies in segment j.
    lane = jax.lax.broadcasted_iota(jnp.int32, (gw, g), 0)
    seg = jax.lax.broadcasted_iota(jnp.int32, (gw, g), 1)
    sel = ((lane >= seg * w) & (lane < (seg + 1) * w)).astype(jnp.float32)

    # Segmented lane-sum on the otherwise idle MXU (f32-exact with HIGHEST).
    s = jnp.dot(t, sel, preferred_element_type=jnp.float32,
                precision=jax.lax.Precision.HIGHEST)

    # mean^(1/p) = exp((log(s) + log(1/W)) / p); the divide-by-W folds into the
    # log and the second pow runs only on the reduced (Lb, G) tile.
    y = jnp.exp((jnp.log(s) + log_inv_w) * inv_p)
    o_ref[...] = y.astype(o_ref.dtype)


def gem_pallas(x, p, eps=1e-06, block_bytes=2 * 1024 * 1024):
    """x: (N, C, H, W) float array, p: (1,) float array. Returns (N, C, H, 1)."""
    N, C, H, W = x.shape
    R = N * C * H

    # Pack G rows of width W into one lane-row of width G*W (multiple of 128):
    # a pure row-major reshape, so no HBM relayout copy is needed.
    G = math.lcm(W, 128) // W
    GW = G * W

    R_pad = pl.cdiv(R, G) * G
    xf = x.reshape(R, W)
    if R_pad != R:
        # Rare case (N*C*H not a multiple of G): a single pad copy; pad rows are
        # GeM(1) == 1 and are sliced off below.
        xf = jnp.pad(xf, ((0, R_pad - R), (0, 0)), constant_values=1.0)
    RG = R_pad // G
    x2d = xf.reshape(RG, GW)                      # layout-preserving, no copy

    # Block rows from a VMEM byte budget; each input block is one contiguous DMA.
    itemsize = int(jnp.dtype(x.dtype).itemsize)
    rows_budget = max(8, (block_bytes // (GW * itemsize)) // 8 * 8)
    if RG <= rows_budget:
        Lb = RG                                   # single full block
    else:
        Lb = rows_budget
        nb = pl.cdiv(RG, Lb)
        if nb > 1 and nb % 2 == 1:
            # v7x: the "parallel" grid axis is split across 2 TensorCores;
            # prefer an even block count so neither core idles.
            nb += 1
            Lb = min(rows_budget, max(8, ((pl.cdiv(RG, nb) + 7) // 8) * 8))
    n_blocks = pl.cdiv(RG, Lb)

    cost = pl.CostEstimate(
        flops=int(2 * R_pad * W + 2 * RG * GW * G),       # clamp/mul + MXU sum
        transcendentals=int(2 * R_pad * W + 2 * R_pad),   # log/exp + final pow
        bytes_accessed=int(R_pad * W * itemsize + R_pad * itemsize),
    )

    out = pl.pallas_call(
        partial(_gem_kernel, eps=float(eps), w=W, log_inv_w=float(-math.log(W))),
        out_shape=jax.ShapeDtypeStruct((RG, G), x.dtype),
        grid=(n_blocks,),
        in_specs=[
            pl.BlockSpec(memory_space=pltpu.SMEM),        # p parameter (scalar)
            pl.BlockSpec((Lb, GW), lambda i: (i, 0)),     # packed input rows
        ],
        out_specs=pl.BlockSpec((Lb, G), lambda i: (i, 0)),
        compiler_params=pltpu.CompilerParams(
            dimension_semantics=("parallel",),
            vmem_limit_bytes=32 * 1024 * 1024,
        ),
        cost_estimate=cost,
    )(p, x2d)

    return out.reshape(R_pad)[:R].reshape(N, C, H, 1)


def gem_reference(x, p, eps=1e-06):
    """Pure-JAX reference matching the PyTorch module."""
    xc = jnp.maximum(x, eps)
    xp = jnp.power(xc, p[0])
    m = jnp.mean(xp, axis=-1, keepdims=True)
    return jnp.power(m, 1.0 / p[0])


if __name__ == "__main__":
    key = jax.random.PRNGKey(0)

    # Small shapes consistent with the GeM calls in C3D_VGG.forward
    # (those see (n, 128, num_bin, H*W/num_bin); kept small here).
    N, C, H, W = 2, 4, 16, 16
    x = jax.random.normal(key, (N, C, H, W), dtype=jnp.float32)

    # Parameter initialized as in GeM.__init__: p = ones(1) * 6.5
    p = jnp.ones((1,), dtype=jnp.float32) * 6.5

    y = gem_pallas(x, p, eps=1e-06)
    jax.block_until_ready(y)
    y_ref = gem_reference(x, p, eps=1e-06)
    assert y.shape == (N, C, H, 1), y.shape
    assert jnp.allclose(y, y_ref, rtol=1e-4, atol=1e-5), (
        float(jnp.max(jnp.abs(y - y_ref)))
    )

    # Row count not a multiple of the packing factor G -> exercises the pad path.
    x2 = jax.random.normal(jax.random.PRNGKey(1), (2, 3, 5, 16), dtype=jnp.float32)
    y2 = gem_pallas(x2, p)
    jax.block_until_ready(y2)
    assert y2.shape == (2, 3, 5, 1), y2.shape
    assert jnp.allclose(y2, gem_reference(x2, p), rtol=1e-4, atol=1e-5)

    # Tiny block budget -> multi-block grid with a partial (masked) last block.
    x3 = jax.random.normal(jax.random.PRNGKey(2), (2, 4, 20, 16), dtype=jnp.float32)
    y3 = gem_pallas(x3, p, block_bytes=4096)
    jax.block_until_ready(y3)
    assert y3.shape == (2, 4, 20, 1), y3.shape
    assert jnp.allclose(y3, gem_reference(x3, p), rtol=1e-4, atol=1e-5)

    print("KERNEL_OK")
</pallas_src>

<mosaic_0001>
module attributes {stable_mosaic.version = 11 : i64} {
  func.func @_gem_kernel(%arg0: i32, %arg1: memref<1xf32, #tpu.memory_space<smem>>, %arg2: memref<16x128xf32, #tpu.memory_space<vmem>>, %arg3: memref<16x8xf32, #tpu.memory_space<vmem>>) attributes {dimension_semantics = [#tpu.dimension_semantics<parallel>], iteration_bounds = array<i64: 1>, scalar_prefetch = 0 : i64, scratch_operands = 0 : i64, tpu.core_type = #tpu.core_type<tc>, window_params = [{transform_indices = @transform_0, window_bounds = array<i64: 1>}, {transform_indices = @transform_1, window_bounds = array<i64: 16, 128>}, {transform_indices = @transform_2, window_bounds = array<i64: 16, 8>}]} {
    %c0 = arith.constant 0 : index
    %0 = memref.load %arg1[%c0] : memref<1xf32, #tpu.memory_space<smem>>
    %cst = arith.constant 1.000000e+00 : f32
    %1 = arith.divf %cst, %0 : f32
    %c0_0 = arith.constant 0 : index
    %c0_1 = arith.constant 0 : index
    %2 = vector.load %arg2[%c0_0, %c0_1] : memref<16x128xf32, #tpu.memory_space<vmem>>, vector<16x128xf32>
    %cst_2 = arith.constant 9.99999997E-7 : f32
    %3 = vector.broadcast %cst_2 : f32 to vector<16x128xf32>
    %4 = arith.maximumf %2, %3 : vector<16x128xf32>
    %5 = math.log %4 : vector<16x128xf32>
    %6 = vector.broadcast %0 : f32 to vector<16x128xf32>
    %7 = arith.mulf %6, %5 : vector<16x128xf32>
    %8 = math.exp %7 : vector<16x128xf32>
    %9 = tpu.iota {dimensions = array<i32: 0>} : vector<128x8xi32>
    %10 = tpu.iota {dimensions = array<i32: 1>} : vector<128x8xi32>
    %c16_i32 = arith.constant 16 : i32
    %11 = vector.broadcast %c16_i32 : i32 to vector<128x8xi32>
    %12 = arith.muli %10, %11 : vector<128x8xi32>
    %13 = arith.cmpi sge, %9, %12 : vector<128x8xi32>
    %c1_i32 = arith.constant 1 : i32
    %14 = vector.broadcast %c1_i32 : i32 to vector<128x8xi32>
    %15 = arith.addi %10, %14 : vector<128x8xi32>
    %c16_i32_3 = arith.constant 16 : i32
    %16 = vector.broadcast %c16_i32_3 : i32 to vector<128x8xi32>
    %17 = arith.muli %15, %16 : vector<128x8xi32>
    %18 = arith.cmpi slt, %9, %17 : vector<128x8xi32>
    %19 = arith.andi %13, %18 : vector<128x8xi1>
    %20 = arith.extui %19 : vector<128x8xi1> to vector<128x8xi32>
    %21 = arith.sitofp %20 : vector<128x8xi32> to vector<128x8xf32>
    %cst_4 = arith.constant dense<0.000000e+00> : vector<16x8xf32>
    %22 = tpu.matmul %8, %21, %cst_4 {dimension_numbers = #tpu.dot_dimension_numbers<[1], [0], [0], [1], [0, 0, 1, 1], [], []>, precision = #tpu.contract_precision<fp32>} : vector<16x128xf32>, vector<128x8xf32>, vector<16x8xf32> -> vector<16x8xf32>
    %23 = math.log %22 : vector<16x8xf32>
    %cst_5 = arith.constant -2.77258873 : f32
    %24 = vector.broadcast %cst_5 : f32 to vector<16x8xf32>
    %25 = arith.addf %23, %24 : vector<16x8xf32>
    %26 = vector.broadcast %1 : f32 to vector<16x8xf32>
    %27 = arith.mulf %25, %26 : vector<16x8xf32>
    %28 = math.exp %27 : vector<16x8xf32>
    %c0_6 = arith.constant 0 : index
    %c0_7 = arith.constant 0 : index
    %29 = vector.load %arg3[%c0_6, %c0_7] : memref<16x8xf32, #tpu.memory_space<vmem>>, vector<16x8xf32>
    tpu.vector_store %arg3[%c0_6, %c0_7], %28 {strides = array<i32>} : memref<16x8xf32, #tpu.memory_space<vmem>>, vector<16x8xf32>,
    return
  }
  func.func @transform_0(%arg0: i32) -> i32 {
    %c0_i32 = arith.constant 0 : i32
    %c0_i32_0 = arith.constant 0 : i32
    return %c0_i32 : i32
  }
  func.func @transform_1(%arg0: i32) -> (i32, i32) {
    %c0_i32 = arith.constant 0 : i32
    %c0_i32_0 = arith.constant 0 : i32
    return %arg0, %c0_i32 : i32, i32
  }
  func.func @transform_2(%arg0: i32) -> (i32, i32) {
    %c0_i32 = arith.constant 0 : i32
    %c0_i32_0 = arith.constant 0 : i32
    return %arg0, %c0_i32 : i32, i32
  }
}

</mosaic_0001>

<llo_original>
// kernel: tpu_custom_call.1
$region0: #{tpu_custom_call.1}
  #allocation0 [shape = 'u32[]', space=smem, size = 0x4, offset = 0x4, fixed_abs, tag = 'smem constant byte address 0x4 - core index']
  #allocation1 [shape = 'u32[144,128]{1,0:T(1,128)}', space=vmem, size = 0x12000, scoped, tag = 'internal scratch']
  #allocation2 [shape = 'f32[1]{0:T(128)S(6)}', space=smem, size = 0x200, scoped, tag = 'scoped memory for tpu_custom_call.1']
  %s0 = inlined_call_operand.<no memory space> [shape: f32[1], index: 0, kind: input, shape index: {}]
  %s1 = inlined_call_operand.hbm [shape: f32[16,128], index: 1, kind: input, shape index: {}]
  %s2 = inlined_call_operand.vmem [shape: f32[16,8], index: 2, kind: output, shape index: {}]
  %s3 = sld [smem:[#allocation0]]
  $region22: #{tpu_custom_call.1} parent=0
    _
  %s5 = ssub.s32 1, %s3
  %s6 = scalar_select 0, %s5, %s3
  %7 = sst [smem:[#allocation2]] %s0
  $region1: #{tpu_custom_call.1} parent=0
    #allocation3 [shape = 'u8[8192]{0}', space=vmem, size = 0x2000, scoped, tag = 'input window, operand 1, single buffered']
    #allocation4 [shape = 's32[1]{0}', space=sflag, size = 0x4, scoped, tag = 'scoped memory for tpu_custom_call.1']
    %8 = vsyncpa [#allocation4], 0
    // Predicated region
    $region2: #{tpu_custom_call.1} parent=1 // pred_check
      _
    $region3: #{tpu_custom_call.1} parent=1 // pred_check_branch
      %10 = sbr.rel (0) target = $region5
    $region4: #{tpu_custom_call.1} parent=1 // pred_region
      _
    $region5: #{tpu_custom_call.1} parent=1 // pred_fallthru
      _
    // Predicated region
    $region6: #{tpu_custom_call.1} parent=1 // pred_check
      _
    $region7: #{tpu_custom_call.1} parent=1 // pred_check_branch
      %12 = sbr.rel (0) target = $region9
    $region8: #{tpu_custom_call.1} parent=1 // pred_region
      %s14 = ssub.s32 256, 256
      %15 = vsyncadd [#allocation4], %s14
      %s16 = sshll.u32 [#allocation3], 4
      %s17 = int_to_ptr.vmem [resolvable:$true] %s16
      %22 = dma.hbm_to_vmem [thread:$0]  %s1, 256, %s17, [#allocation4], 128, 128, 8
    $region9: #{tpu_custom_call.1} parent=1 // pred_fallthru
      _
    // Predicated region
    $region10: #{tpu_custom_call.1} parent=1 // pred_check
      _
    $region11: #{tpu_custom_call.1} parent=1 // pred_check_branch
      %24 = sbr.rel (0) target = $region13
    $region12: #{tpu_custom_call.1} parent=1 // pred_region
      %25 = dma.done [#allocation4], 256
    $region13: #{tpu_custom_call.1} parent=1 // pred_fallthru
      _
    %s26 = sld [smem:[#allocation2]]
    %v27 = vstv %s26
    %v28 = vrcp.pop %v27
    %s29 = vtos %v28
    %v30 = vld [vmem:[#allocation3] sm:$0xff]
    %v31 = vld [vmem:[#allocation3 + $0x8] sm:$0xff]
    %v32 = vmax.f32 %v30, 1e-06
    %v33 = vmax.f32 %v31, 1e-06
    %v34 = vlog2.pop %v32
    %v35 = vmul.f32 %v34, 0.6931472
    %v36 = vlog2.pop %v33
    %v37 = vmul.f32 %v36, 0.6931472
    %v38 = vstv %s26
    %v39 = vmul.f32 %v38, %v35
    %v40 = vmul.f32 %v38, %v37
    %v41 = vmul.f32 %v39, 1.442695
    %v42 = vpow.pop %v41
    %v43 = vmul.f32 %v40, 1.442695
    %v44 = vpow.pop %v43
    %v45 = vlaneseq
    %v46 = vshrl.u32 %v45, 7
    %v47 = vadd.s32 %v46, 8
    %v48 = vadd.s32 %v46, 16
    %v49 = vadd.s32 %v46, 24
    %v50 = vadd.s32 %v46, 32
    %v51 = vadd.s32 %v46, 40
    %v52 = vadd.s32 %v46, 48
    %v53 = vadd.s32 %v46, 56
    %v54 = vadd.s32 %v46, 64
    %v55 = vadd.s32 %v46, 72
    %v56 = vadd.s32 %v46, 80
    %v57 = vadd.s32 %v46, 88
    %v58 = vadd.s32 %v46, 96
    %v59 = vadd.s32 %v46, 104
    %v60 = vadd.s32 %v46, 112
    %v61 = vadd.s32 %v46, 120
    %v62 = vlaneseq
    %v63 = vand.u32 %v62, 127
    %v64 = vmul.u32 %v63, 16
    %vm65 = vcmp.ge.s32.totalorder %v46, %v64
    %vm66 = vcmp.ge.s32.totalorder %v47, %v64
    %vm67 = vcmp.ge.s32.totalorder %v48, %v64
    %vm68 = vcmp.ge.s32.totalorder %v49, %v64
    %vm69 = vcmp.ge.s32.totalorder %v50, %v64
    %vm70 = vcmp.ge.s32.totalorder %v51, %v64
    %vm71 = vcmp.ge.s32.totalorder %v52, %v64
    %vm72 = vcmp.ge.s32.totalorder %v53, %v64
    %vm73 = vcmp.ge.s32.totalorder %v54, %v64
    %vm74 = vcmp.ge.s32.totalorder %v55, %v64
    %vm75 = vcmp.ge.s32.totalorder %v56, %v64
    %vm76 = vcmp.ge.s32.totalorder %v57, %v64
    %vm77 = vcmp.ge.s32.totalorder %v58, %v64
    %vm78 = vcmp.ge.s32.totalorder %v59, %v64
    %vm79 = vcmp.ge.s32.totalorder %v60, %v64
    %vm80 = vcmp.ge.s32.totalorder %v61, %v64
    %v81 = vadd.s32 %v63, 1
    %v82 = vmul.u32 %v81, 16
    %vm83 = vcmp.lt.s32.totalorder %v46, %v82
    %vm84 = vcmp.lt.s32.totalorder %v47, %v82
    %vm85 = vcmp.lt.s32.totalorder %v48, %v82
    %vm86 = vcmp.lt.s32.totalorder %v49, %v82
    %vm87 = vcmp.lt.s32.totalorder %v50, %v82
    %vm88 = vcmp.lt.s32.totalorder %v51, %v82
    %vm89 = vcmp.lt.s32.totalorder %v52, %v82
    %vm90 = vcmp.lt.s32.totalorder %v53, %v82
    %vm91 = vcmp.lt.s32.totalorder %v54, %v82
    %vm92 = vcmp.lt.s32.totalorder %v55, %v82
    %vm93 = vcmp.lt.s32.totalorder %v56, %v82
    %vm94 = vcmp.lt.s32.totalorder %v57, %v82
    %vm95 = vcmp.lt.s32.totalorder %v58, %v82
    %vm96 = vcmp.lt.s32.totalorder %v59, %v82
    %vm97 = vcmp.lt.s32.totalorder %v60, %v82
    %vm98 = vcmp.lt.s32.totalorder %v61, %v82
    %vm99 = vmand %vm65, %vm83
    %vm100 = vmand %vm66, %vm84
    %vm101 = vmand %vm67, %vm85
    %vm102 = vmand %vm68, %vm86
    %vm103 = vmand %vm69, %vm87
    %vm104 = vmand %vm70, %vm88
    %vm105 = vmand %vm71, %vm89
    %vm106 = vmand %vm72, %vm90
    %vm107 = vmand %vm73, %vm91
    %vm108 = vmand %vm74, %vm92
    %vm109 = vmand %vm75, %vm93
    %vm110 = vmand %vm76, %vm94
    %vm111 = vmand %vm77, %vm95
    %vm112 = vmand %vm78, %vm96
    %vm113 = vmand %vm79, %vm97
    %vm114 = vmand %vm80, %vm98
    %v115 = vsel %vm99, 1, 0
    %v116 = vsel %vm100, 1, 0
    %v117 = vsel %vm101, 1, 0
    %v118 = vsel %vm102, 1, 0
    %v119 = vsel %vm103, 1, 0
    %v120 = vsel %vm104, 1, 0
    %v121 = vsel %vm105, 1, 0
    %v122 = vsel %vm106, 1, 0
    %v123 = vsel %vm107, 1, 0
    %v124 = vsel %vm108, 1, 0
    %v125 = vsel %vm109, 1, 0
    %v126 = vsel %vm110, 1, 0
    %v127 = vsel %vm111, 1, 0
    %v128 = vsel %vm112, 1, 0
    %v129 = vsel %vm113, 1, 0
    %v130 = vsel %vm114, 1, 0
    %v131 = vcvt.s32.f32 %v115
    %v132 = vcvt.s32.f32 %v116
    %v133 = vcvt.s32.f32 %v117
    %v134 = vcvt.s32.f32 %v118
    %v135 = vcvt.s32.f32 %v119
    %v136 = vcvt.s32.f32 %v120
    %v137 = vcvt.s32.f32 %v121
    %v138 = vcvt.s32.f32 %v122
    %v139 = vcvt.s32.f32 %v123
    %v140 = vcvt.s32.f32 %v124
    %v141 = vcvt.s32.f32 %v125
    %v142 = vcvt.s32.f32 %v126
    %v143 = vcvt.s32.f32 %v127
    %v144 = vcvt.s32.f32 %v128
    %v145 = vcvt.s32.f32 %v129
    %v146 = vcvt.s32.f32 %v130
    %147 = vmatprep.subr.mxu0 0.0
    %v148 = vand.u32 %v146, 4294901760
    %149 = vmatpush1.msra.mxu0 %v148
    %150 = vmatprep.subr.mxu0 0.0
    %v151 = vand.u32 %v145, 4294901760
    %152 = vmatpush1.msra.mxu0 %v151
    %153 = vmatprep.subr.mxu0 0.0
    %v154 = vand.u32 %v144, 4294901760
    %155 = vmatpush1.msra.mxu0 %v154
    %156 = vmatprep.subr.mxu0 0.0
    %v157 = vand.u32 %v143, 4294901760
    %158 = vmatpush1.msra.mxu0 %v157
    %159 = vmatprep.subr.mxu0 0.0
    %v160 = vand.u32 %v142, 4294901760
    %161 = vmatpush1.msra.mxu0 %v160
    %162 = vmatprep.subr.mxu0 0.0
    %v163 = vand.u32 %v141, 4294901760
    %164 = vmatpush1.msra.mxu0 %v163
    %165 = vmatprep.subr.mxu0 0.0
    %v166 = vand.u32 %v140, 4294901760
    %167 = vmatpush1.msra.mxu0 %v166
    %168 = vmatprep.subr.mxu0 0.0
    %v169 = vand.u32 %v139, 4294901760
    %170 = vmatpush1.msra.mxu0 %v169
    %171 = vmatprep.subr.mxu0 0.0
    %v172 = vand.u32 %v138, 4294901760
    %173 = vmatpush1.msra.mxu0 %v172
    %174 = vmatprep.subr.mxu0 0.0
    %v175 = vand.u32 %v137, 4294901760
    %176 = vmatpush1.msra.mxu0 %v175
    %177 = vmatprep.subr.mxu0 0.0
    %v178 = vand.u32 %v136, 4294901760
    %179 = vmatpush1.msra.mxu0 %v178
    %180 = vmatprep.subr.mxu0 0.0
    %v181 = vand.u32 %v135, 4294901760
    %182 = vmatpush1.msra.mxu0 %v181
    %183 = vmatprep.subr.mxu0 0.0
    %v184 = vand.u32 %v134, 4294901760
    %185 = vmatpush1.msra.mxu0 %v184
    %186 = vmatprep.subr.mxu0 0.0
    %v187 = vand.u32 %v133, 4294901760
    %188 = vmatpush1.msra.mxu0 %v187
    %189 = vmatprep.subr.mxu0 0.0
    %v190 = vand.u32 %v132, 4294901760
    %191 = vmatpush1.msra.mxu0 %v190
    %192 = vmatprep.subr.mxu0 0.0
    %v193 = vand.u32 %v131, 4294901760
    %194 = vmatpush1.msra.mxu0 %v193
    %195 = vmatprep.subr.mxu0 0.0
    %196 = vmatpush2.msra.mxu0 0.0
    %197 = vmatprep.subr.mxu0 0.0
    %198 = vmatpush2.msra.mxu0 0.0
    %199 = vmatprep.subr.mxu0 0.0
    %200 = vmatpush2.msra.mxu0 0.0
    %201 = vmatprep.subr.mxu0 0.0
    %202 = vmatpush2.msra.mxu0 0.0
    %203 = vmatprep.subr.mxu0 0.0
    %204 = vmatpush2.msra.mxu0 0.0
    %205 = vmatprep.subr.mxu0 0.0
    %206 = vmatpush2.msra.mxu0 0.0
    %207 = vmatprep.subr.mxu0 0.0
    %208 = vmatpush2.msra.mxu0 0.0
    %209 = vmatprep.subr.mxu0 0.0
    %210 = vmatpush2.msra.mxu0 0.0
    %211 = vmatprep.subr.mxu0 0.0
    %212 = vmatpush2.msra.mxu0 0.0
    %213 = vmatprep.subr.mxu0 0.0
    %214 = vmatpush2.msra.mxu0 0.0
    %215 = vmatprep.subr.mxu0 0.0
    %216 = vmatpush2.msra.mxu0 0.0
    %217 = vmatprep.subr.mxu0 0.0
    %218 = vmatpush2.msra.mxu0 0.0
    %219 = vmatprep.subr.mxu0 0.0
    %220 = vmatpush2.msra.mxu0 0.0
    %221 = vmatprep.subr.mxu0 0.0
    %222 = vmatpush2.msra.mxu0 0.0
    %223 = vmatprep.subr.mxu0 0.0
    %224 = vmatpush2.msra.mxu0 0.0
    %225 = vmatprep.subr.mxu0 0.0
    %226 = vmatpush2.msra.mxu0 0.0
    %227 = vmatprep.mubr.f32.mxu0 0.0
    %v228 = vand.u32 %v42, 4294901760
    %v229 = vsub.f32 %v42, %v228
    %v230 = vand.u32 %v229, 4294901760
    %v231 = vsub.f32 %v229, %v230
    %v232 = vand.u32 %v231, 4294901760
    %233 = vmatmul.mubr.f32.gmra.mxu0 %v232
    %v234 = vpop.f32.mrf.mxu0
    %v235 = vadd.f32 0.0, %v234
    %v236 = vpop.f32.mrf.mxu0
    %237 = vmatprep.mubr.f32.mxu0 0.0
    %v238 = vand.u32 %v44, 4294901760
    %v239 = vsub.f32 %v44, %v238
    %v240 = vand.u32 %v239, 4294901760
    %v241 = vsub.f32 %v239, %v240
    %v242 = vand.u32 %v241, 4294901760
    %243 = vmatmul.mubr.f32.gmra.mxu0 %v242
    %v244 = vpop.f32.mrf.mxu0
    %v245 = vadd.f32 0.0, %v244
    %v246 = vpop.f32.mrf.mxu0
    %247 = vdwg.mxu0
    %248 = vmatprep.subr.mxu0 0.0
    %v249 = vand.u32 %v146, 4294901760
    %v250 = vsub.f32 %v146, %v249
    %v251 = vand.u32 %v250, 4294901760
    %v252 = vsub.f32 %v250, %v251
    %v253 = vand.u32 %v252, 4294901760
    %254 = vmatpush1.msra.mxu0 %v253
    %255 = vmatprep.subr.mxu0 0.0
    %v256 = vand.u32 %v145, 4294901760
    %v257 = vsub.f32 %v145, %v256
    %v258 = vand.u32 %v257, 4294901760
    %v259 = vsub.f32 %v257, %v258
    %v260 = vand.u32 %v259, 4294901760
    %261 = vmatpush1.msra.mxu0 %v260
    %262 = vmatprep.subr.mxu0 0.0
    %v263 = vand.u32 %v144, 4294901760
    %v264 = vsub.f32 %v144, %v263
    %v265 = vand.u32 %v264, 4294901760
    %v266 = vsub.f32 %v264, %v265
    %v267 = vand.u32 %v266, 4294901760
    %268 = vmatpush1.msra.mxu0 %v267
    %269 = vmatprep.subr.mxu0 0.0
    %v270 = vand.u32 %v143, 4294901760
    %v271 = vsub.f32 %v143, %v270
    %v272 = vand.u32 %v271, 4294901760
    %v273 = vsub.f32 %v271, %v272
    %v274 = vand.u32 %v273, 4294901760
    %275 = vmatpush1.msra.mxu0 %v274
    %276 = vmatprep.subr.mxu0 0.0
    %v277 = vand.u32 %v142, 4294901760
    %v278 = vsub.f32 %v142, %v277
    %v279 = vand.u32 %v278, 4294901760
    %v280 = vsub.f32 %v278, %v279
    %v281 = vand.u32 %v280, 4294901760
    %282 = vmatpush1.msra.mxu0 %v281
    %283 = vmatprep.subr.mxu0 0.0
    %v284 = vand.u32 %v141, 4294901760
    %v285 = vsub.f32 %v141, %v284
    %v286 = vand.u32 %v285, 4294901760
    %v287 = vsub.f32 %v285, %v286
    %v288 = vand.u32 %v287, 4294901760
    %289 = vmatpush1.msra.mxu0 %v288
    %290 = vmatprep.subr.mxu0 0.0
    %v291 = vand.u32 %v140, 4294901760
    %v292 = vsub.f32 %v140, %v291
    %v293 = vand.u32 %v292, 4294901760
    %v294 = vsub.f32 %v292, %v293
    %v295 = vand.u32 %v294, 4294901760
    %296 = vmatpush1.msra.mxu0 %v295
    %297 = vmatprep.subr.mxu0 0.0
    %v298 = vand.u32 %v139, 4294901760
    %v299 = vsub.f32 %v139, %v298
    %v300 = vand.u32 %v299, 4294901760
    %v301 = vsub.f32 %v299, %v300
    %v302 = vand.u32 %v301, 4294901760
    %303 = vmatpush1.msra.mxu0 %v302
    %304 = vmatprep.subr.mxu0 0.0
    %v305 = vand.u32 %v138, 4294901760
    %v306 = vsub.f32 %v138, %v305
    %v307 = vand.u32 %v306, 4294901760
    %v308 = vsub.f32 %v306, %v307
    %v309 = vand.u32 %v308, 4294901760
    %310 = vmatpush1.msra.mxu0 %v309
    %311 = vmatprep.subr.mxu0 0.0
    %v312 = vand.u32 %v137, 4294901760
    %v313 = vsub.f32 %v137, %v312
    %v314 = vand.u32 %v313, 4294901760
    %v315 = vsub.f32 %v313, %v314
    %v316 = vand.u32 %v315, 4294901760
    %317 = vmatpush1.msra.mxu0 %v316
    %318 = vmatprep.subr.mxu0 0.0
    %v319 = vand.u32 %v136, 4294901760
    %v320 = vsub.f32 %v136, %v319
    %v321 = vand.u32 %v320, 4294901760
    %v322 = vsub.f32 %v320, %v321
    %v323 = vand.u32 %v322, 4294901760
    %324 = vmatpush1.msra.mxu0 %v323
    %325 = vmatprep.subr.mxu0 0.0
    %v326 = vand.u32 %v135, 4294901760
    %v327 = vsub.f32 %v135, %v326
    %v328 = vand.u32 %v327, 4294901760
    %v329 = vsub.f32 %v327, %v328
    %v330 = vand.u32 %v329, 4294901760
    %331 = vmatpush1.msra.mxu0 %v330
    %332 = vmatprep.subr.mxu0 0.0
    %v333 = vand.u32 %v134, 4294901760
    %v334 = vsub.f32 %v134, %v333
    %v335 = vand.u32 %v334, 4294901760
    %v336 = vsub.f32 %v334, %v335
    %v337 = vand.u32 %v336, 4294901760
    %338 = vmatpush1.msra.mxu0 %v337
    %339 = vmatprep.subr.mxu0 0.0
    %v340 = vand.u32 %v133, 4294901760
    %v341 = vsub.f32 %v133, %v340
    %v342 = vand.u32 %v341, 4294901760
    %v343 = vsub.f32 %v341, %v342
    %v344 = vand.u32 %v343, 4294901760
    %345 = vmatpush1.msra.mxu0 %v344
    %346 = vmatprep.subr.mxu0 0.0
    %v347 = vand.u32 %v132, 4294901760
    %v348 = vsub.f32 %v132, %v347
    %v349 = vand.u32 %v348, 4294901760
    %v350 = vsub.f32 %v348, %v349
    %v351 = vand.u32 %v350, 4294901760
    %352 = vmatpush1.msra.mxu0 %v351
    %353 = vmatprep.subr.mxu0 0.0
    %v354 = vand.u32 %v131, 4294901760
    %v355 = vsub.f32 %v131, %v354
    %v356 = vand.u32 %v355, 4294901760
    %v357 = vsub.f32 %v355, %v356
    %v358 = vand.u32 %v357, 4294901760
    %359 = vmatpush1.msra.mxu0 %v358
    %360 = vmatprep.subr.mxu0 0.0
    %361 = vmatpush2.msra.mxu0 0.0
    %362 = vmatprep.subr.mxu0 0.0
    %363 = vmatpush2.msra.mxu0 0.0
    %364 = vmatprep.subr.mxu0 0.0
    %365 = vmatpush2.msra.mxu0 0.0
    %366 = vmatprep.subr.mxu0 0.0
    %367 = vmatpush2.msra.mxu0 0.0
    %368 = vmatprep.subr.mxu0 0.0
    %369 = vmatpush2.msra.mxu0 0.0
    %370 = vmatprep.subr.mxu0 0.0
    %371 = vmatpush2.msra.mxu0 0.0
    %372 = vmatprep.subr.mxu0 0.0
    %373 = vmatpush2.msra.mxu0 0.0
    %374 = vmatprep.subr.mxu0 0.0
    %375 = vmatpush2.msra.mxu0 0.0
    %376 = vmatprep.subr.mxu0 0.0
    %377 = vmatpush2.msra.mxu0 0.0
    %378 = vmatprep.subr.mxu0 0.0
    %379 = vmatpush2.msra.mxu0 0.0
    %380 = vmatprep.subr.mxu0 0.0
    %381 = vmatpush2.msra.mxu0 0.0
    %382 = vmatprep.subr.mxu0 0.0
    %383 = vmatpush2.msra.mxu0 0.0
    %384 = vmatprep.subr.mxu0 0.0
    %385 = vmatpush2.msra.mxu0 0.0
    %386 = vmatprep.subr.mxu0 0.0
    %387 = vmatpush2.msra.mxu0 0.0
    %388 = vmatprep.subr.mxu0 0.0
    %389 = vmatpush2.msra.mxu0 0.0
    %390 = vmatprep.subr.mxu0 0.0
    %391 = vmatpush2.msra.mxu0 0.0
    %392 = vmatprep.mubr.f32.mxu0 0.0
    %v393 = vand.u32 %v42, 4294901760
    %394 = vmatmul.mubr.f32.gmra.mxu0 %v393
    %v395 = vpop.f32.mrf.mxu0
    %v396 = vadd.f32 %v235, %v395
    %v397 = vpop.f32.mrf.mxu0
    %398 = vmatprep.mubr.f32.mxu0 0.0
    %v399 = vand.u32 %v44, 4294901760
    %400 = vmatmul.mubr.f32.gmra.mxu0 %v399
    %v401 = vpop.f32.mrf.mxu0
    %v402 = vadd.f32 %v245, %v401
    %v403 = vpop.f32.mrf.mxu0
    %404 = vdwg.mxu0
    %405 = vmatprep.subr.mxu0 0.0
    %v406 = vand.u32 %v146, 4294901760
    %v407 = vsub.f32 %v146, %v406
    %408 = vmatpush1.msra.mxu0 %v407
    %409 = vmatprep.subr.mxu0 0.0
    %v410 = vand.u32 %v145, 4294901760
    %v411 = vsub.f32 %v145, %v410
    %412 = vmatpush1.msra.mxu0 %v411
    %413 = vmatprep.subr.mxu0 0.0
    %v414 = vand.u32 %v144, 4294901760
    %v415 = vsub.f32 %v144, %v414
    %416 = vmatpush1.msra.mxu0 %v415
    %417 = vmatprep.subr.mxu0 0.0
    %v418 = vand.u32 %v143, 4294901760
    %v419 = vsub.f32 %v143, %v418
    %420 = vmatpush1.msra.mxu0 %v419
    %421 = vmatprep.subr.mxu0 0.0
    %v422 = vand.u32 %v142, 4294901760
    %v423 = vsub.f32 %v142, %v422
    %424 = vmatpush1.msra.mxu0 %v423
    %425 = vmatprep.subr.mxu0 0.0
    %v426 = vand.u32 %v141, 4294901760
    %v427 = vsub.f32 %v141, %v426
    %428 = vmatpush1.msra.mxu0 %v427
    %429 = vmatprep.subr.mxu0 0.0
    %v430 = vand.u32 %v140, 4294901760
    %v431 = vsub.f32 %v140, %v430
    %432 = vmatpush1.msra.mxu0 %v431
    %433 = vmatprep.subr.mxu0 0.0
    %v434 = vand.u32 %v139, 4294901760
    %v435 = vsub.f32 %v139, %v434
    %436 = vmatpush1.msra.mxu0 %v435
    %437 = vmatprep.subr.mxu0 0.0
    %v438 = vand.u32 %v138, 4294901760
    %v439 = vsub.f32 %v138, %v438
    %440 = vmatpush1.msra.mxu0 %v439
    %441 = vmatprep.subr.mxu0 0.0
    %v442 = vand.u32 %v137, 4294901760
    %v443 = vsub.f32 %v137, %v442
    %444 = vmatpush1.msra.mxu0 %v443
    %445 = vmatprep.subr.mxu0 0.0
    %v446 = vand.u32 %v136, 4294901760
    %v447 = vsub.f32 %v136, %v446
    %448 = vmatpush1.msra.mxu0 %v447
    %449 = vmatprep.subr.mxu0 0.0
    %v450 = vand.u32 %v135, 4294901760
    %v451 = vsub.f32 %v135, %v450
    %452 = vmatpush1.msra.mxu0 %v451
    %453 = vmatprep.subr.mxu0 0.0
    %v454 = vand.u32 %v134, 4294901760
    %v455 = vsub.f32 %v134, %v454
    %456 = vmatpush1.msra.mxu0 %v455
    %457 = vmatprep.subr.mxu0 0.0
    %v458 = vand.u32 %v133, 4294901760
    %v459 = vsub.f32 %v133, %v458
    %460 = vmatpush1.msra.mxu0 %v459
    %461 = vmatprep.subr.mxu0 0.0
    %v462 = vand.u32 %v132, 4294901760
    %v463 = vsub.f32 %v132, %v462
    %464 = vmatpush1.msra.mxu0 %v463
    %465 = vmatprep.subr.mxu0 0.0
    %v466 = vand.u32 %v131, 4294901760
    %v467 = vsub.f32 %v131, %v466
    %468 = vmatpush1.msra.mxu0 %v467
    %469 = vmatprep.subr.mxu0 0.0
    %470 = vmatpush2.msra.mxu0 0.0
    %471 = vmatprep.subr.mxu0 0.0
    %472 = vmatpush2.msra.mxu0 0.0
    %473 = vmatprep.subr.mxu0 0.0
    %474 = vmatpush2.msra.mxu0 0.0
    %475 = vmatprep.subr.mxu0 0.0
    %476 = vmatpush2.msra.mxu0 0.0
    %477 = vmatprep.subr.mxu0 0.0
    %478 = vmatpush2.msra.mxu0 0.0
    %479 = vmatprep.subr.mxu0 0.0
    %480 = vmatpush2.msra.mxu0 0.0
    %481 = vmatprep.subr.mxu0 0.0
    %482 = vmatpush2.msra.mxu0 0.0
    %483 = vmatprep.subr.mxu0 0.0
    %484 = vmatpush2.msra.mxu0 0.0
    %485 = vmatprep.subr.mxu0 0.0
    %486 = vmatpush2.msra.mxu0 0.0
    %487 = vmatprep.subr.mxu0 0.0
    %488 = vmatpush2.msra.mxu0 0.0
    %489 = vmatprep.subr.mxu0 0.0
    %490 = vmatpush2.msra.mxu0 0.0
    %491 = vmatprep.subr.mxu0 0.0
    %492 = vmatpush2.msra.mxu0 0.0
    %493 = vmatprep.subr.mxu0 0.0
    %494 = vmatpush2.msra.mxu0 0.0
    %495 = vmatprep.subr.mxu0 0.0
    %496 = vmatpush2.msra.mxu0 0.0
    %497 = vmatprep.subr.mxu0 0.0
    %498 = vmatpush2.msra.mxu0 0.0
    %499 = vmatprep.subr.mxu0 0.0
    %500 = vmatpush2.msra.mxu0 0.0
    %501 = vmatprep.mubr.f32.mxu0 0.0
    %v502 = vand.u32 %v42, 4294901760
    %v503 = vsub.f32 %v42, %v502
    %504 = vmatmul.mubr.f32.gmra.mxu0 %v503
    %v505 = vpop.f32.mrf.mxu0
    %v506 = vadd.f32 %v396, %v505
    %v507 = vpop.f32.mrf.mxu0
    %508 = vmatprep.mubr.f32.mxu0 0.0
    %v509 = vand.u32 %v44, 4294901760
    %v510 = vsub.f32 %v44, %v509
    %511 = vmatmul.mubr.f32.gmra.mxu0 %v510
    %v512 = vpop.f32.mrf.mxu0
    %v513 = vadd.f32 %v402, %v512
    %v514 = vpop.f32.mrf.mxu0
    %515 = vdwg.mxu0
    %516 = vmatprep.subr.mxu0 0.0
    %v517 = vand.u32 %v146, 4294901760
    %518 = vmatpush1.msra.mxu0 %v517
    %519 = vmatprep.subr.mxu0 0.0
    %v520 = vand.u32 %v145, 4294901760
    %521 = vmatpush1.msra.mxu0 %v520
    %522 = vmatprep.subr.mxu0 0.0
    %v523 = vand.u32 %v144, 4294901760
    %524 = vmatpush1.msra.mxu0 %v523
    %525 = vmatprep.subr.mxu0 0.0
    %v526 = vand.u32 %v143, 4294901760
    %527 = vmatpush1.msra.mxu0 %v526
    %528 = vmatprep.subr.mxu0 0.0
    %v529 = vand.u32 %v142, 4294901760
    %530 = vmatpush1.msra.mxu0 %v529
    %531 = vmatprep.subr.mxu0 0.0
    %v532 = vand.u32 %v141, 4294901760
    %533 = vmatpush1.msra.mxu0 %v532
    %534 = vmatprep.subr.mxu0 0.0
    %v535 = vand.u32 %v140, 4294901760
    %536 = vmatpush1.msra.mxu0 %v535
    %537 = vmatprep.subr.mxu0 0.0
    %v538 = vand.u32 %v139, 4294901760
    %539 = vmatpush1.msra.mxu0 %v538
    %540 = vmatprep.subr.mxu0 0.0
    %v541 = vand.u32 %v138, 4294901760
    %542 = vmatpush1.msra.mxu0 %v541
    %543 = vmatprep.subr.mxu0 0.0
    %v544 = vand.u32 %v137, 4294901760
    %545 = vmatpush1.msra.mxu0 %v544
    %546 = vmatprep.subr.mxu0 0.0
    %v547 = vand.u32 %v136, 4294901760
    %548 = vmatpush1.msra.mxu0 %v547
    %549 = vmatprep.subr.mxu0 0.0
    %v550 = vand.u32 %v135, 4294901760
    %551 = vmatpush1.msra.mxu0 %v550
    %552 = vmatprep.subr.mxu0 0.0
    %v553 = vand.u32 %v134, 4294901760
    %554 = vmatpush1.msra.mxu0 %v553
    %555 = vmatprep.subr.mxu0 0.0
    %v556 = vand.u32 %v133, 4294901760
    %557 = vmatpush1.msra.mxu0 %v556
    %558 = vmatprep.subr.mxu0 0.0
    %v559 = vand.u32 %v132, 4294901760
    %560 = vmatpush1.msra.mxu0 %v559
    %561 = vmatprep.subr.mxu0 0.0
    %v562 = vand.u32 %v131, 4294901760
    %563 = vmatpush1.msra.mxu0 %v562
    %564 = vmatprep.subr.mxu0 0.0
    %565 = vmatpush2.msra.mxu0 0.0
    %566 = vmatprep.subr.mxu0 0.0
    %567 = vmatpush2.msra.mxu0 0.0
    %568 = vmatprep.subr.mxu0 0.0
    %569 = vmatpush2.msra.mxu0 0.0
    %570 = vmatprep.subr.mxu0 0.0
    %571 = vmatpush2.msra.mxu0 0.0
    %572 = vmatprep.subr.mxu0 0.0
    %573 = vmatpush2.msra.mxu0 0.0
    %574 = vmatprep.subr.mxu0 0.0
    %575 = vmatpush2.msra.mxu0 0.0
    %576 = vmatprep.subr.mxu0 0.0
    %577 = vmatpush2.msra.mxu0 0.0
    %578 = vmatprep.subr.mxu0 0.0
    %579 = vmatpush2.msra.mxu0 0.0
    %580 = vmatprep.subr.mxu0 0.0
    %581 = vmatpush2.msra.mxu0 0.0
    %582 = vmatprep.subr.mxu0 0.0
    %583 = vmatpush2.msra.mxu0 0.0
    %584 = vmatprep.subr.mxu0 0.0
    %585 = vmatpush2.msra.mxu0 0.0
    %586 = vmatprep.subr.mxu0 0.0
    %587 = vmatpush2.msra.mxu0 0.0
    %588 = vmatprep.subr.mxu0 0.0
    %589 = vmatpush2.msra.mxu0 0.0
    %590 = vmatprep.subr.mxu0 0.0
    %591 = vmatpush2.msra.mxu0 0.0
    %592 = vmatprep.subr.mxu0 0.0
    %593 = vmatpush2.msra.mxu0 0.0
    %594 = vmatprep.subr.mxu0 0.0
    %595 = vmatpush2.msra.mxu0 0.0
    %596 = vmatprep.mubr.f32.mxu0 0.0
    %v597 = vand.u32 %v42, 4294901760
    %v598 = vsub.f32 %v42, %v597
    %v599 = vand.u32 %v598, 4294901760
    %600 = vmatmul.mubr.f32.gmra.mxu0 %v599
    %v601 = vpop.f32.mrf.mxu0
    %v602 = vadd.f32 %v506, %v601
    %v603 = vpop.f32.mrf.mxu0
    %604 = vmatprep.mubr.f32.mxu0 0.0
    %v605 = vand.u32 %v44, 4294901760
    %v606 = vsub.f32 %v44, %v605
    %v607 = vand.u32 %v606, 4294901760
    %608 = vmatmul.mubr.f32.gmra.mxu0 %v607
    %v609 = vpop.f32.mrf.mxu0
    %v610 = vadd.f32 %v513, %v609
    %v611 = vpop.f32.mrf.mxu0
    %612 = vdwg.mxu0
    %613 = vmatprep.subr.mxu0 0.0
    %v614 = vand.u32 %v146, 4294901760
    %v615 = vsub.f32 %v146, %v614
    %v616 = vand.u32 %v615, 4294901760
    %617 = vmatpush1.msra.mxu0 %v616
    %618 = vmatprep.subr.mxu0 0.0
    %v619 = vand.u32 %v145, 4294901760
    %v620 = vsub.f32 %v145, %v619
    %v621 = vand.u32 %v620, 4294901760
    %622 = vmatpush1.msra.mxu0 %v621
    %623 = vmatprep.subr.mxu0 0.0
    %v624 = vand.u32 %v144, 4294901760
    %v625 = vsub.f32 %v144, %v624
    %v626 = vand.u32 %v625, 4294901760
    %627 = vmatpush1.msra.mxu0 %v626
    %628 = vmatprep.subr.mxu0 0.0
    %v629 = vand.u32 %v143, 4294901760
    %v630 = vsub.f32 %v143, %v629
    %v631 = vand.u32 %v630, 4294901760
    %632 = vmatpush1.msra.mxu0 %v631
    %633 = vmatprep.subr.mxu0 0.0
    %v634 = vand.u32 %v142, 4294901760
    %v635 = vsub.f32 %v142, %v634
    %v636 = vand.u32 %v635, 4294901760
    %637 = vmatpush1.msra.mxu0 %v636
    %638 = vmatprep.subr.mxu0 0.0
    %v639 = vand.u32 %v141, 4294901760
    %v640 = vsub.f32 %v141, %v639
    %v641 = vand.u32 %v640, 4294901760
    %642 = vmatpush1.msra.mxu0 %v641
    %643 = vmatprep.subr.mxu0 0.0
    %v644 = vand.u32 %v140, 4294901760
    %v645 = vsub.f32 %v140, %v644
    %v646 = vand.u32 %v645, 4294901760
    %647 = vmatpush1.msra.mxu0 %v646
    %648 = vmatprep.subr.mxu0 0.0
    %v649 = vand.u32 %v139, 4294901760
    %v650 = vsub.f32 %v139, %v649
    %v651 = vand.u32 %v650, 4294901760
    %652 = vmatpush1.msra.mxu0 %v651
    %653 = vmatprep.subr.mxu0 0.0
    %v654 = vand.u32 %v138, 4294901760
    %v655 = vsub.f32 %v138, %v654
    %v656 = vand.u32 %v655, 4294901760
    %657 = vmatpush1.msra.mxu0 %v656
    %658 = vmatprep.subr.mxu0 0.0
    %v659 = vand.u32 %v137, 4294901760
    %v660 = vsub.f32 %v137, %v659
    %v661 = vand.u32 %v660, 4294901760
    %662 = vmatpush1.msra.mxu0 %v661
    %663 = vmatprep.subr.mxu0 0.0
    %v664 = vand.u32 %v136, 4294901760
    %v665 = vsub.f32 %v136, %v664
    %v666 = vand.u32 %v665, 4294901760
    %667 = vmatpush1.msra.mxu0 %v666
    %668 = vmatprep.subr.mxu0 0.0
    %v669 = vand.u32 %v135, 4294901760
    %v670 = vsub.f32 %v135, %v669
    %v671 = vand.u32 %v670, 4294901760
    %672 = vmatpush1.msra.mxu0 %v671
    %673 = vmatprep.subr.mxu0 0.0
    %v674 = vand.u32 %v134, 4294901760
    %v675 = vsub.f32 %v134, %v674
    %v676 = vand.u32 %v675, 4294901760
    %677 = vmatpush1.msra.mxu0 %v676
    %678 = vmatprep.subr.mxu0 0.0
    %v679 = vand.u32 %v133, 4294901760
    %v680 = vsub.f32 %v133, %v679
    %v681 = vand.u32 %v680, 4294901760
    %682 = vmatpush1.msra.mxu0 %v681
    %683 = vmatprep.subr.mxu0 0.0
    %v684 = vand.u32 %v132, 4294901760
    %v685 = vsub.f32 %v132, %v684
    %v686 = vand.u32 %v685, 4294901760
    %687 = vmatpush1.msra.mxu0 %v686
    %688 = vmatprep.subr.mxu0 0.0
    %v689 = vand.u32 %v131, 4294901760
    %v690 = vsub.f32 %v131, %v689
    %v691 = vand.u32 %v690, 4294901760
    %692 = vmatpush1.msra.mxu0 %v691
    %693 = vmatprep.subr.mxu0 0.0
    %694 = vmatpush2.msra.mxu0 0.0
    %695 = vmatprep.subr.mxu0 0.0
    %696 = vmatpush2.msra.mxu0 0.0
    %697 = vmatprep.subr.mxu0 0.0
    %698 = vmatpush2.msra.mxu0 0.0
    %699 = vmatprep.subr.mxu0 0.0
    %700 = vmatpush2.msra.mxu0 0.0
    %701 = vmatprep.subr.mxu0 0.0
    %702 = vmatpush2.msra.mxu0 0.0
    %703 = vmatprep.subr.mxu0 0.0
    %704 = vmatpush2.msra.mxu0 0.0
    %705 = vmatprep.subr.mxu0 0.0
    %706 = vmatpush2.msra.mxu0 0.0
    %707 = vmatprep.subr.mxu0 0.0
    %708 = vmatpush2.msra.mxu0 0.0
    %709 = vmatprep.subr.mxu0 0.0
    %710 = vmatpush2.msra.mxu0 0.0
    %711 = vmatprep.subr.mxu0 0.0
    %712 = vmatpush2.msra.mxu0 0.0
    %713 = vmatprep.subr.mxu0 0.0
    %714 = vmatpush2.msra.mxu0 0.0
    %715 = vmatprep.subr.mxu0 0.0
    %716 = vmatpush2.msra.mxu0 0.0
    %717 = vmatprep.subr.mxu0 0.0
    %718 = vmatpush2.msra.mxu0 0.0
    %719 = vmatprep.subr.mxu0 0.0
    %720 = vmatpush2.msra.mxu0 0.0
    %721 = vmatprep.subr.mxu0 0.0
    %722 = vmatpush2.msra.mxu0 0.0
    %723 = vmatprep.subr.mxu0 0.0
    %724 = vmatpush2.msra.mxu0 0.0
    %725 = vmatprep.mubr.f32.mxu0 0.0
    %v726 = vand.u32 %v42, 4294901760
    %727 = vmatmul.mubr.f32.gmra.mxu0 %v726
    %v728 = vpop.f32.mrf.mxu0
    %v729 = vadd.f32 %v602, %v728
    %v730 = vpop.f32.mrf.mxu0
    %731 = vmatprep.mubr.f32.mxu0 0.0
    %v732 = vand.u32 %v44, 4294901760
    %733 = vmatmul.mubr.f32.gmra.mxu0 %v732
    %v734 = vpop.f32.mrf.mxu0
    %v735 = vadd.f32 %v610, %v734
    %v736 = vpop.f32.mrf.mxu0
    %737 = vdwg.mxu0
    %738 = vmatprep.subr.mxu0 0.0
    %v739 = vand.u32 %v146, 4294901760
    %740 = vmatpush1.msra.mxu0 %v739
    %741 = vmatprep.subr.mxu0 0.0
    %v742 = vand.u32 %v145, 4294901760
    %743 = vmatpush1.msra.mxu0 %v742
    %744 = vmatprep.subr.mxu0 0.0
    %v745 = vand.u32 %v144, 4294901760
    %746 = vmatpush1.msra.mxu0 %v745
    %747 = vmatprep.subr.mxu0 0.0
    %v748 = vand.u32 %v143, 4294901760
    %749 = vmatpush1.msra.mxu0 %v748
    %750 = vmatprep.subr.mxu0 0.0
    %v751 = vand.u32 %v142, 4294901760
    %752 = vmatpush1.msra.mxu0 %v751
    %753 = vmatprep.subr.mxu0 0.0
    %v754 = vand.u32 %v141, 4294901760
    %755 = vmatpush1.msra.mxu0 %v754
    %756 = vmatprep.subr.mxu0 0.0
    %v757 = vand.u32 %v140, 4294901760
    %758 = vmatpush1.msra.mxu0 %v757
    %759 = vmatprep.subr.mxu0 0.0
    %v760 = vand.u32 %v139, 4294901760
    %761 = vmatpush1.msra.mxu0 %v760
    %762 = vmatprep.subr.mxu0 0.0
    %v763 = vand.u32 %v138, 4294901760
    %764 = vmatpush1.msra.mxu0 %v763
    %765 = vmatprep.subr.mxu0 0.0
    %v766 = vand.u32 %v137, 4294901760
    %767 = vmatpush1.msra.mxu0 %v766
    %768 = vmatprep.subr.mxu0 0.0
    %v769 = vand.u32 %v136, 4294901760
    %770 = vmatpush1.msra.mxu0 %v769
    %771 = vmatprep.subr.mxu0 0.0
    %v772 = vand.u32 %v135, 4294901760
    %773 = vmatpush1.msra.mxu0 %v772
    %774 = vmatprep.subr.mxu0 0.0
    %v775 = vand.u32 %v134, 4294901760
    %776 = vmatpush1.msra.mxu0 %v775
    %777 = vmatprep.subr.mxu0 0.0
    %v778 = vand.u32 %v133, 4294901760
    %779 = vmatpush1.msra.mxu0 %v778
    %780 = vmatprep.subr.mxu0 0.0
    %v781 = vand.u32 %v132, 4294901760
    %782 = vmatpush1.msra.mxu0 %v781
    %783 = vmatprep.subr.mxu0 0.0
    %v784 = vand.u32 %v131, 4294901760
    %785 = vmatpush1.msra.mxu0 %v784
    %786 = vmatprep.subr.mxu0 0.0
    %787 = vmatpush2.msra.mxu0 0.0
    %788 = vmatprep.subr.mxu0 0.0
    %789 = vmatpush2.msra.mxu0 0.0
    %790 = vmatprep.subr.mxu0 0.0
    %791 = vmatpush2.msra.mxu0 0.0
    %792 = vmatprep.subr.mxu0 0.0
    %793 = vmatpush2.msra.mxu0 0.0
    %794 = vmatprep.subr.mxu0 0.0
    %795 = vmatpush2.msra.mxu0 0.0
    %796 = vmatprep.subr.mxu0 0.0
    %797 = vmatpush2.msra.mxu0 0.0
    %798 = vmatprep.subr.mxu0 0.0
    %799 = vmatpush2.msra.mxu0 0.0
    %800 = vmatprep.subr.mxu0 0.0
    %801 = vmatpush2.msra.mxu0 0.0
    %802 = vmatprep.subr.mxu0 0.0
    %803 = vmatpush2.msra.mxu0 0.0
    %804 = vmatprep.subr.mxu0 0.0
    %805 = vmatpush2.msra.mxu0 0.0
    %806 = vmatprep.subr.mxu0 0.0
    %807 = vmatpush2.msra.mxu0 0.0
    %808 = vmatprep.subr.mxu0 0.0
    %809 = vmatpush2.msra.mxu0 0.0
    %810 = vmatprep.subr.mxu0 0.0
    %811 = vmatpush2.msra.mxu0 0.0
    %812 = vmatprep.subr.mxu0 0.0
    %813 = vmatpush2.msra.mxu0 0.0
    %814 = vmatprep.subr.mxu0 0.0
    %815 = vmatpush2.msra.mxu0 0.0
    %816 = vmatprep.subr.mxu0 0.0
    %817 = vmatpush2.msra.mxu0 0.0
    %818 = vmatprep.mubr.f32.mxu0 0.0
    %v819 = vand.u32 %v42, 4294901760
    %820 = vmatmul.mubr.f32.gmra.mxu0 %v819
    %v821 = vpop.f32.mrf.mxu0
    %v822 = vadd.f32 %v729, %v821
    %v823 = vpop.f32.mrf.mxu0
    %824 = vmatprep.mubr.f32.mxu0 0.0
    %v825 = vand.u32 %v44, 4294901760
    %826 = vmatmul.mubr.f32.gmra.mxu0 %v825
    %v827 = vpop.f32.mrf.mxu0
    %v828 = vadd.f32 %v735, %v827
    %v829 = vpop.f32.mrf.mxu0
    %830 = vdwg.mxu0
    %v831 = vlog2.pop %v822
    %v832 = vmul.f32 %v831, 0.6931472
    %v833 = vlog2.pop %v828
    %v834 = vmul.f32 %v833, 0.6931472
    %v835 = vadd.f32 %v832, -2.7725887
    %v836 = vadd.f32 %v834, -2.7725887
    %v837 = vstv %s29
    %v838 = vmul.f32 %v835, %v837
    %v839 = vmul.f32 %v836, %v837
    %v840 = vmul.f32 %v838, 1.442695
    %v841 = vpow.pop %v840
    %v842 = vmul.f32 %v839, 1.442695
    %v843 = vpow.pop %v842
    %vm844 = vcmask 64512
    %845 = vst.msk [vmem:[%s2] sm:$0xff] %vm844, %v841
    %846 = vst.msk [vmem:[%s2 + $0x8] sm:$0xff] %vm844, %v843
    // Predicated region
    $region14: #{tpu_custom_call.1} parent=1 // pred_check
      _
    $region15: #{tpu_custom_call.1} parent=1 // pred_check_branch
      %848 = sbr.rel (0) target = $region17
    $region16: #{tpu_custom_call.1} parent=1 // pred_region
      _
    $region17: #{tpu_custom_call.1} parent=1 // pred_fallthru
      _
    // Predicated region
    $region18: #{tpu_custom_call.1} parent=1 // pred_check
      _
    $region19: #{tpu_custom_call.1} parent=1 // pred_check_branch
      %850 = sbr.rel (0) target = $region21
    $region20: #{tpu_custom_call.1} parent=1 // pred_region
      _
    $region21: #{tpu_custom_call.1} parent=1 // pred_fallthru
      _
    %851 = vsyncpa [#allocation4], 1

</llo_original>
